<compile_context>
chip_gen: v7x
topology: tpu7x:2x2x1
jax: 0.10.0
libtpu: 0.0.40
codegen_flags: <defaults>
</compile_context>

<pallas_src>
import jax
import jax.numpy as jnp
from jax.experimental import pallas as pl
from jax.experimental.pallas import tpu as pltpu

EPS = 1e-5                      # torch.nn.LayerNorm default
_SQRT_2_OVER_PI = 0.7978845608028654


def _gelu_tanh(x):
    # tanh-approximate GELU: tanh goes to the EUP (its own VLIW slot).
    return 0.5 * x * (1.0 + jnp.tanh(_SQRT_2_OVER_PI * (x + 0.044715 * x * x * x)))


def _layernorm(x, gamma, beta):
    # One-pass statistics: sum and sum-of-squares, var = E[x^2] - mu^2.
    d = x.shape[-1]
    inv_d = 1.0 / d
    s = jnp.sum(x, axis=-1, keepdims=True)
    ss = jnp.sum(x * x, axis=-1, keepdims=True)
    mu = s * inv_d
    var = ss * inv_d - mu * mu
    return (x - mu) * jax.lax.rsqrt(var + EPS) * gamma + beta


def mixer_kernel(x_ref,
                 g1_ref, b1_ref,            # ln_token gamma/beta        (1, D)  f32
                 wt1t_ref, bt1_ref,          # token fc1: W^T (Tm, S) bf16, bias (Tm, 1) f32
                 wt2t_ref, bt2_ref,          # token fc2: W^T (S, Tm) bf16, bias (S, 1)  f32
                 g2_ref, b2_ref,             # ln_channel gamma/beta      (1, D)  f32
                 wc1_ref, bc1_ref,           # channel fc1: (D, Cm) bf16,  bias (1, Cm) f32
                 wc2_ref, bc2_ref,           # channel fc2: (Cm, D) bf16,  bias (1, D)  f32
                 o_ref):
    bt, s, d = x_ref.shape
    bf16 = jnp.bfloat16

    x = x_ref[...].astype(jnp.float32)             # (bt, S, D)
    xf = x.reshape(bt * s, d)                      # (bt*S, D) -- contiguous view

    # ---- token mixing (transpose-free) ---------------------------------
    ln = _layernorm(xf, g1_ref[0], b1_ref[0])      # (bt*S, D) fp32

    if bt == 1:
        ln_t = ln                                  # (S, D) == (S, bt*D), no relayout
    else:
        # (bt, S, D) -> (S, bt*D): major-axis relayout (sublane copies, no
        # lane-level XLU transpose).  Weights are shared across batch, so
        # stacking along D is exact.
        ln_t = jnp.swapaxes(ln.reshape(bt, s, d), 0, 1).reshape(s, bt * d)

    y = jnp.dot(wt1t_ref[...], ln_t.astype(bf16),
                preferred_element_type=jnp.float32) + bt1_ref[...]      # (Tm, bt*D)
    h = _gelu_tanh(y)
    tm = jnp.dot(wt2t_ref[...], h.astype(bf16),
                 preferred_element_type=jnp.float32) + bt2_ref[...]     # (S, bt*D)

    if bt == 1:
        tm_sd = tm
    else:
        tm_sd = jnp.swapaxes(tm.reshape(s, bt, d), 0, 1).reshape(bt * s, d)

    x1 = xf + tm_sd                                # residual, (bt*S, D) fp32

    # ---- channel mixing -------------------------------------------------
    ln2 = _layernorm(x1, g2_ref[0], b2_ref[0])     # (bt*S, D)
    h2 = _gelu_tanh(
        jnp.dot(ln2.astype(bf16), wc1_ref[...],
                preferred_element_type=jnp.float32) + bc1_ref[0])       # (bt*S, Cm)
    cm = jnp.dot(h2.astype(bf16), wc2_ref[...],
                 preferred_element_type=jnp.float32) + bc2_ref[0]       # (bt*S, D)

    o_ref[...] = (x1 + cm).reshape(bt, s, d).astype(o_ref.dtype)


def _pick_block_batch(batch, seq):
    """Batch elements per grid step: ~512 rows per block, keep >=2 grid steps."""
    target = max(1, 512 // max(seq, 1))
    bt = min(batch, target)
    while bt > 1 and batch % bt:
        bt -= 1
    if bt == batch and batch > 1:          # leave >=2 parallel steps (v7x: 2 TCs)
        bt = batch // 2
        while bt > 1 and batch % bt:
            bt -= 1
    return max(bt, 1)


@jax.jit
def mixer_block(x, params):
    B, S, D = x.shape
    (g1, b1, wt1, bt1, wt2, bt2, g2, b2, wc1, bc1, wc2, bc2) = params
    bf16 = jnp.bfloat16
    f32 = jnp.float32
    Tm = wt1.shape[1]
    Cm = wc1.shape[1]

    # Kernel-layout params: bf16 matmul weights (token-mix ones pre-transposed),
    # fp32 column/row biases and LayerNorm affine params.
    kparams = (
        g1.reshape(1, D).astype(f32), b1.reshape(1, D).astype(f32),
        wt1.T.astype(bf16),                      # (Tm, S)
        bt1.reshape(Tm, 1).astype(f32),          # (Tm, 1)
        wt2.T.astype(bf16),                      # (S, Tm)
        bt2.reshape(S, 1).astype(f32),           # (S, 1)
        g2.reshape(1, D).astype(f32), b2.reshape(1, D).astype(f32),
        wc1.astype(bf16),                        # (D, Cm)
        bc1.reshape(1, Cm).astype(f32),          # (1, Cm)
        wc2.astype(bf16),                        # (Cm, D)
        bc2.reshape(1, D).astype(f32),           # (1, D)
    )

    bt = _pick_block_batch(B, S)
    grid = (B // bt,)

    in_specs = [pl.BlockSpec((bt, S, D), lambda i: (i, 0, 0))]
    for p in kparams:
        # Full-array blocks for the (small) weights; same block every grid step.
        in_specs.append(pl.BlockSpec(p.shape, lambda i, n=p.ndim: (0,) * n))

    # Explicit VMEM budget: double-buffered x/out blocks + weights + fp32
    # intermediates, capped at 64 MiB so the limit is valid on v7x too.
    block_bytes = bt * S * D * x.dtype.itemsize
    w_bytes = sum(p.size * p.dtype.itemsize for p in kparams)
    interm_bytes = bt * S * max(D, Cm) * 4
    est = 4 * block_bytes + 2 * w_bytes + 6 * interm_bytes + (4 << 20)
    vmem_limit = int(min(64 << 20, max(16 << 20, est)))

    # NOTE: for production Mixer shapes, pad S/D/Tm/Cm to multiples of 128
    # (256 preferred on v6e/v7x) in the wrapper for lane-dense stores and
    # unpadded MXU passes; the toy demo shapes are used as full-array blocks.
    return pl.pallas_call(
        mixer_kernel,
        out_shape=jax.ShapeDtypeStruct((B, S, D), x.dtype),
        grid_spec=pltpu.PrefetchScalarGridSpec(
            num_scalar_prefetch=0,
            grid=grid,
            in_specs=in_specs,
            out_specs=pl.BlockSpec((bt, S, D), lambda i: (i, 0, 0)),
        ),
        compiler_params=pltpu.CompilerParams(
            dimension_semantics=("parallel",),
            vmem_limit_bytes=vmem_limit,
        ),
    )(x, *kparams)


def init_params(key, num_tokens, hidden_dim, tokens_mlp_dim, channels_mlp_dim):
    """Math-layout fp32 params: weights are (in, out), biases are 1-D."""
    ks = jax.random.split(key, 12)
    f32 = jnp.float32
    w = 0.02
    b = 0.1
    return (
        # ln_token
        1.0 + 0.1 * jax.random.normal(ks[0], (hidden_dim,), f32),        # gamma1
        b * jax.random.normal(ks[1], (hidden_dim,), f32),                # beta1
        # token_mix: Linear(num_tokens, tokens_mlp_dim) -> GELU -> Linear(tokens_mlp_dim, num_tokens)
        w * jax.random.normal(ks[2], (num_tokens, tokens_mlp_dim), f32),  # Wt1
        b * jax.random.normal(ks[3], (tokens_mlp_dim,), f32),             # bt1
        w * jax.random.normal(ks[4], (tokens_mlp_dim, num_tokens), f32),  # Wt2
        b * jax.random.normal(ks[5], (num_tokens,), f32),                 # bt2
        # ln_channel
        1.0 + 0.1 * jax.random.normal(ks[6], (hidden_dim,), f32),        # gamma2
        b * jax.random.normal(ks[7], (hidden_dim,), f32),                # beta2
        # channel_mix: Linear(hidden_dim, channels_mlp_dim) -> GELU -> Linear(channels_mlp_dim, hidden_dim)
        w * jax.random.normal(ks[8], (hidden_dim, channels_mlp_dim), f32),   # Wc1
        b * jax.random.normal(ks[9], (channels_mlp_dim,), f32),              # bc1
        w * jax.random.normal(ks[10], (channels_mlp_dim, hidden_dim), f32),  # Wc2
        b * jax.random.normal(ks[11], (hidden_dim,), f32),                   # bc2
    )


def mixer_block_ref(x, params):
    """Pure-JAX fp32 reference mirroring the PyTorch forward (exact-erf GELU)."""
    (g1, b1, wt1, bt1, wt2, bt2, g2, b2, wc1, bc1, wc2, bc2) = params

    def ln(v, g, bb):
        mu = jnp.mean(v, axis=-1, keepdims=True)
        var = jnp.mean((v - mu) ** 2, axis=-1, keepdims=True)
        return (v - mu) / jnp.sqrt(var + EPS) * g + bb

    def gelu_exact(v):
        return 0.5 * v * (1.0 + jax.scipy.special.erf(v / jnp.sqrt(2.0)))

    out = jnp.swapaxes(ln(x, g1, b1), 1, 2)                  # (B, D, S)
    tm = gelu_exact(out @ wt1 + bt1) @ wt2 + bt2             # (B, D, S)
    x1 = x + jnp.swapaxes(tm, 1, 2)                          # (B, S, D)
    out2 = ln(x1, g2, b2)
    cm = gelu_exact(out2 @ wc1 + bc1) @ wc2 + bc2            # (B, S, D)
    return x1 + cm


if __name__ == "__main__":
    B, S, D = 2, 8, 32            # batch, num_tokens, hidden_dim
    Tm, Cm = 16, 64               # tokens_mlp_dim, channels_mlp_dim

    key = jax.random.PRNGKey(0)
    kx, kp = jax.random.split(key)
    x = jax.random.normal(kx, (B, S, D), jnp.float32)
    params = init_params(kp, S, D, Tm, Cm)

    y = jax.block_until_ready(mixer_block(x, params))
    y_ref = mixer_block_ref(x, params)

    assert y.shape == (B, S, D)
    max_err = float(jnp.max(jnp.abs(y - y_ref)))
    # bf16 matmul operands + tanh-approx GELU -> relaxed tolerance vs. the
    # exact-erf fp32 reference (as noted in the performance review).
    assert jnp.allclose(y, y_ref, atol=1e-2, rtol=1e-2), f"mismatch vs reference: {max_err}"

    print("KERNEL_OK")
</pallas_src>

<mosaic_0001>
module attributes {stable_mosaic.version = 11 : i64} {
  func.func @mixer_kernel(%arg0: i32, %arg1: memref<1x8x32xf32, #tpu.memory_space<vmem>>, %arg2: memref<1x32xf32, #tpu.memory_space<vmem>>, %arg3: memref<1x32xf32, #tpu.memory_space<vmem>>, %arg4: memref<16x8xbf16, #tpu.memory_space<vmem>>, %arg5: memref<16x1xf32, #tpu.memory_space<vmem>>, %arg6: memref<8x16xbf16, #tpu.memory_space<vmem>>, %arg7: memref<8x1xf32, #tpu.memory_space<vmem>>, %arg8: memref<1x32xf32, #tpu.memory_space<vmem>>, %arg9: memref<1x32xf32, #tpu.memory_space<vmem>>, %arg10: memref<32x64xbf16, #tpu.memory_space<vmem>>, %arg11: memref<1x64xf32, #tpu.memory_space<vmem>>, %arg12: memref<64x32xbf16, #tpu.memory_space<vmem>>, %arg13: memref<1x32xf32, #tpu.memory_space<vmem>>, %arg14: memref<1x8x32xf32, #tpu.memory_space<vmem>>) attributes {dimension_semantics = [#tpu.dimension_semantics<parallel>], iteration_bounds = array<i64: 2>, scalar_prefetch = 0 : i64, scratch_operands = 0 : i64, tpu.core_type = #tpu.core_type<tc>, window_params = [{transform_indices = @transform_0, window_bounds = array<i64: 1, 8, 32>}, {pipeline_mode = #tpu.pipeline_mode<synchronous>, transform_indices = @transform_1, window_bounds = array<i64: 1, 32>}, {pipeline_mode = #tpu.pipeline_mode<synchronous>, transform_indices = @transform_2, window_bounds = array<i64: 1, 32>}, {pipeline_mode = #tpu.pipeline_mode<synchronous>, transform_indices = @transform_3, window_bounds = array<i64: 16, 8>}, {pipeline_mode = #tpu.pipeline_mode<synchronous>, transform_indices = @transform_4, window_bounds = array<i64: 16, 1>}, {pipeline_mode = #tpu.pipeline_mode<synchronous>, transform_indices = @transform_5, window_bounds = array<i64: 8, 16>}, {pipeline_mode = #tpu.pipeline_mode<synchronous>, transform_indices = @transform_6, window_bounds = array<i64: 8, 1>}, {pipeline_mode = #tpu.pipeline_mode<synchronous>, transform_indices = @transform_7, window_bounds = array<i64: 1, 32>}, {pipeline_mode = #tpu.pipeline_mode<synchronous>, transform_indices = @transform_8, window_bounds = array<i64: 1, 32>}, {pipeline_mode = #tpu.pipeline_mode<synchronous>, transform_indices = @transform_9, window_bounds = array<i64: 32, 64>}, {pipeline_mode = #tpu.pipeline_mode<synchronous>, transform_indices = @transform_10, window_bounds = array<i64: 1, 64>}, {pipeline_mode = #tpu.pipeline_mode<synchronous>, transform_indices = @transform_11, window_bounds = array<i64: 64, 32>}, {pipeline_mode = #tpu.pipeline_mode<synchronous>, transform_indices = @transform_12, window_bounds = array<i64: 1, 32>}, {transform_indices = @transform_13, window_bounds = array<i64: 1, 8, 32>}]} {
    %c0 = arith.constant 0 : index
    %c0_0 = arith.constant 0 : index
    %c0_1 = arith.constant 0 : index
    %0 = vector.load %arg1[%c0, %c0_0, %c0_1] : memref<1x8x32xf32, #tpu.memory_space<vmem>>, vector<1x8x32xf32>
    %1 = vector.shape_cast %0 : vector<1x8x32xf32> to vector<8x32xf32>
    %c0_2 = arith.constant 0 : index
    %c0_3 = arith.constant 0 : index
    %2 = vector.load %arg2[%c0_2, %c0_3] : memref<1x32xf32, #tpu.memory_space<vmem>>, vector<1x32xf32>
    %3 = vector.shape_cast %2 : vector<1x32xf32> to vector<32xf32>
    %c0_4 = arith.constant 0 : index
    %c0_5 = arith.constant 0 : index
    %4 = vector.load %arg3[%c0_4, %c0_5] : memref<1x32xf32, #tpu.memory_space<vmem>>, vector<1x32xf32>
    %5 = vector.shape_cast %4 : vector<1x32xf32> to vector<32xf32>
    %cst = arith.constant dense<0.000000e+00> : vector<8xf32>
    %6 = vector.multi_reduction <add>, %1, %cst [1] : vector<8x32xf32> to vector<8xf32>
    %7 = vector.shape_cast %6 : vector<8xf32> to vector<8x1xf32>
    %8 = arith.mulf %1, %1 : vector<8x32xf32>
    %cst_6 = arith.constant dense<0.000000e+00> : vector<8xf32>
    %9 = vector.multi_reduction <add>, %8, %cst_6 [1] : vector<8x32xf32> to vector<8xf32>
    %10 = vector.shape_cast %9 : vector<8xf32> to vector<8x1xf32>
    %cst_7 = arith.constant 3.125000e-02 : f32
    %11 = vector.broadcast %cst_7 : f32 to vector<8x1xf32>
    %12 = arith.mulf %7, %11 : vector<8x1xf32>
    %cst_8 = arith.constant 3.125000e-02 : f32
    %13 = vector.broadcast %cst_8 : f32 to vector<8x1xf32>
    %14 = arith.mulf %10, %13 : vector<8x1xf32>
    %15 = arith.mulf %12, %12 : vector<8x1xf32>
    %16 = arith.subf %14, %15 : vector<8x1xf32>
    %17 = vector.broadcast %12 : vector<8x1xf32> to vector<8x32xf32>
    %18 = arith.subf %1, %17 : vector<8x32xf32>
    %cst_9 = arith.constant 9.99999974E-6 : f32
    %19 = vector.broadcast %cst_9 : f32 to vector<8x1xf32>
    %20 = arith.addf %16, %19 : vector<8x1xf32>
    %21 = math.rsqrt %20 : vector<8x1xf32>
    %22 = vector.broadcast %21 : vector<8x1xf32> to vector<8x32xf32>
    %23 = arith.mulf %18, %22 : vector<8x32xf32>
    %24 = vector.shape_cast %3 : vector<32xf32> to vector<1x32xf32>
    %25 = vector.broadcast %24 : vector<1x32xf32> to vector<8x32xf32>
    %26 = arith.mulf %23, %25 : vector<8x32xf32>
    %27 = vector.shape_cast %5 : vector<32xf32> to vector<1x32xf32>
    %28 = vector.broadcast %27 : vector<1x32xf32> to vector<8x32xf32>
    %29 = arith.addf %26, %28 : vector<8x32xf32>
    %c0_10 = arith.constant 0 : index
    %c0_11 = arith.constant 0 : index
    %30 = vector.load %arg4[%c0_10, %c0_11] : memref<16x8xbf16, #tpu.memory_space<vmem>>, vector<16x8xbf16>
    %31 = arith.truncf %29 : vector<8x32xf32> to vector<8x32xbf16>
    %cst_12 = arith.constant dense<0.000000e+00> : vector<16x32xf32>
    %32 = tpu.matmul %30, %31, %cst_12 {dimension_numbers = #tpu.dot_dimension_numbers<[1], [0], [0], [1], [0, 0, 1, 1], [], []>} : vector<16x8xbf16>, vector<8x32xbf16>, vector<16x32xf32> -> vector<16x32xf32>
    %c0_13 = arith.constant 0 : index
    %c0_14 = arith.constant 0 : index
    %33 = vector.load %arg5[%c0_13, %c0_14] : memref<16x1xf32, #tpu.memory_space<vmem>>, vector<16x1xf32>
    %34 = vector.broadcast %33 : vector<16x1xf32> to vector<16x32xf32>
    %35 = arith.addf %32, %34 : vector<16x32xf32>
    %cst_15 = arith.constant 5.000000e-01 : f32
    %36 = vector.broadcast %cst_15 : f32 to vector<16x32xf32>
    %37 = arith.mulf %36, %35 : vector<16x32xf32>
    %cst_16 = arith.constant 4.471500e-02 : f32
    %38 = vector.broadcast %cst_16 : f32 to vector<16x32xf32>
    %39 = arith.mulf %38, %35 : vector<16x32xf32>
    %40 = arith.mulf %39, %35 : vector<16x32xf32>
    %41 = arith.mulf %40, %35 : vector<16x32xf32>
    %42 = arith.addf %35, %41 : vector<16x32xf32>
    %cst_17 = arith.constant 0.797884583 : f32
    %43 = vector.broadcast %cst_17 : f32 to vector<16x32xf32>
    %44 = arith.mulf %43, %42 : vector<16x32xf32>
    %45 = math.tanh %44 : vector<16x32xf32>
    %cst_18 = arith.constant 1.000000e+00 : f32
    %46 = vector.broadcast %cst_18 : f32 to vector<16x32xf32>
    %47 = arith.addf %46, %45 : vector<16x32xf32>
    %48 = arith.mulf %37, %47 : vector<16x32xf32>
    %c0_19 = arith.constant 0 : index
    %c0_20 = arith.constant 0 : index
    %49 = vector.load %arg6[%c0_19, %c0_20] : memref<8x16xbf16, #tpu.memory_space<vmem>>, vector<8x16xbf16>
    %50 = arith.truncf %48 : vector<16x32xf32> to vector<16x32xbf16>
    %cst_21 = arith.constant dense<0.000000e+00> : vector<8x32xf32>
    %51 = tpu.matmul %49, %50, %cst_21 {dimension_numbers = #tpu.dot_dimension_numbers<[1], [0], [0], [1], [0, 0, 1, 1], [], []>} : vector<8x16xbf16>, vector<16x32xbf16>, vector<8x32xf32> -> vector<8x32xf32>
    %c0_22 = arith.constant 0 : index
    %c0_23 = arith.constant 0 : index
    %52 = vector.load %arg7[%c0_22, %c0_23] : memref<8x1xf32, #tpu.memory_space<vmem>>, vector<8x1xf32>
    %53 = vector.broadcast %52 : vector<8x1xf32> to vector<8x32xf32>
    %54 = arith.addf %51, %53 : vector<8x32xf32>
    %55 = arith.addf %1, %54 : vector<8x32xf32>
    %c0_24 = arith.constant 0 : index
    %c0_25 = arith.constant 0 : index
    %56 = vector.load %arg8[%c0_24, %c0_25] : memref<1x32xf32, #tpu.memory_space<vmem>>, vector<1x32xf32>
    %57 = vector.shape_cast %56 : vector<1x32xf32> to vector<32xf32>
    %c0_26 = arith.constant 0 : index
    %c0_27 = arith.constant 0 : index
    %58 = vector.load %arg9[%c0_26, %c0_27] : memref<1x32xf32, #tpu.memory_space<vmem>>, vector<1x32xf32>
    %59 = vector.shape_cast %58 : vector<1x32xf32> to vector<32xf32>
    %cst_28 = arith.constant dense<0.000000e+00> : vector<8xf32>
    %60 = vector.multi_reduction <add>, %55, %cst_28 [1] : vector<8x32xf32> to vector<8xf32>
    %61 = vector.shape_cast %60 : vector<8xf32> to vector<8x1xf32>
    %62 = arith.mulf %55, %55 : vector<8x32xf32>
    %cst_29 = arith.constant dense<0.000000e+00> : vector<8xf32>
    %63 = vector.multi_reduction <add>, %62, %cst_29 [1] : vector<8x32xf32> to vector<8xf32>
    %64 = vector.shape_cast %63 : vector<8xf32> to vector<8x1xf32>
    %cst_30 = arith.constant 3.125000e-02 : f32
    %65 = vector.broadcast %cst_30 : f32 to vector<8x1xf32>
    %66 = arith.mulf %61, %65 : vector<8x1xf32>
    %cst_31 = arith.constant 3.125000e-02 : f32
    %67 = vector.broadcast %cst_31 : f32 to vector<8x1xf32>
    %68 = arith.mulf %64, %67 : vector<8x1xf32>
    %69 = arith.mulf %66, %66 : vector<8x1xf32>
    %70 = arith.subf %68, %69 : vector<8x1xf32>
    %71 = vector.broadcast %66 : vector<8x1xf32> to vector<8x32xf32>
    %72 = arith.subf %55, %71 : vector<8x32xf32>
    %cst_32 = arith.constant 9.99999974E-6 : f32
    %73 = vector.broadcast %cst_32 : f32 to vector<8x1xf32>
    %74 = arith.addf %70, %73 : vector<8x1xf32>
    %75 = math.rsqrt %74 : vector<8x1xf32>
    %76 = vector.broadcast %75 : vector<8x1xf32> to vector<8x32xf32>
    %77 = arith.mulf %72, %76 : vector<8x32xf32>
    %78 = vector.shape_cast %57 : vector<32xf32> to vector<1x32xf32>
    %79 = vector.broadcast %78 : vector<1x32xf32> to vector<8x32xf32>
    %80 = arith.mulf %77, %79 : vector<8x32xf32>
    %81 = vector.shape_cast %59 : vector<32xf32> to vector<1x32xf32>
    %82 = vector.broadcast %81 : vector<1x32xf32> to vector<8x32xf32>
    %83 = arith.addf %80, %82 : vector<8x32xf32>
    %84 = arith.truncf %83 : vector<8x32xf32> to vector<8x32xbf16>
    %c0_33 = arith.constant 0 : index
    %c0_34 = arith.constant 0 : index
    %85 = vector.load %arg10[%c0_33, %c0_34] : memref<32x64xbf16, #tpu.memory_space<vmem>>, vector<32x64xbf16>
    %cst_35 = arith.constant dense<0.000000e+00> : vector<8x64xf32>
    %86 = tpu.matmul %84, %85, %cst_35 {dimension_numbers = #tpu.dot_dimension_numbers<[1], [0], [0], [1], [0, 0, 1, 1], [], []>} : vector<8x32xbf16>, vector<32x64xbf16>, vector<8x64xf32> -> vector<8x64xf32>
    %c0_36 = arith.constant 0 : index
    %c0_37 = arith.constant 0 : index
    %87 = vector.load %arg11[%c0_36, %c0_37] : memref<1x64xf32, #tpu.memory_space<vmem>>, vector<1x64xf32>
    %88 = vector.shape_cast %87 : vector<1x64xf32> to vector<64xf32>
    %89 = vector.shape_cast %88 : vector<64xf32> to vector<1x64xf32>
    %90 = vector.broadcast %89 : vector<1x64xf32> to vector<8x64xf32>
    %91 = arith.addf %86, %90 : vector<8x64xf32>
    %cst_38 = arith.constant 5.000000e-01 : f32
    %92 = vector.broadcast %cst_38 : f32 to vector<8x64xf32>
    %93 = arith.mulf %92, %91 : vector<8x64xf32>
    %cst_39 = arith.constant 4.471500e-02 : f32
    %94 = vector.broadcast %cst_39 : f32 to vector<8x64xf32>
    %95 = arith.mulf %94, %91 : vector<8x64xf32>
    %96 = arith.mulf %95, %91 : vector<8x64xf32>
    %97 = arith.mulf %96, %91 : vector<8x64xf32>
    %98 = arith.addf %91, %97 : vector<8x64xf32>
    %cst_40 = arith.constant 0.797884583 : f32
    %99 = vector.broadcast %cst_40 : f32 to vector<8x64xf32>
    %100 = arith.mulf %99, %98 : vector<8x64xf32>
    %101 = math.tanh %100 : vector<8x64xf32>
    %cst_41 = arith.constant 1.000000e+00 : f32
    %102 = vector.broadcast %cst_41 : f32 to vector<8x64xf32>
    %103 = arith.addf %102, %101 : vector<8x64xf32>
    %104 = arith.mulf %93, %103 : vector<8x64xf32>
    %105 = arith.truncf %104 : vector<8x64xf32> to vector<8x64xbf16>
    %c0_42 = arith.constant 0 : index
    %c0_43 = arith.constant 0 : index
    %106 = vector.load %arg12[%c0_42, %c0_43] : memref<64x32xbf16, #tpu.memory_space<vmem>>, vector<64x32xbf16>
    %cst_44 = arith.constant dense<0.000000e+00> : vector<8x32xf32>
    %107 = tpu.matmul %105, %106, %cst_44 {dimension_numbers = #tpu.dot_dimension_numbers<[1], [0], [0], [1], [0, 0, 1, 1], [], []>} : vector<8x64xbf16>, vector<64x32xbf16>, vector<8x32xf32> -> vector<8x32xf32>
    %c0_45 = arith.constant 0 : index
    %c0_46 = arith.constant 0 : index
    %108 = vector.load %arg13[%c0_45, %c0_46] : memref<1x32xf32, #tpu.memory_space<vmem>>, vector<1x32xf32>
    %109 = vector.shape_cast %108 : vector<1x32xf32> to vector<32xf32>
    %110 = vector.shape_cast %109 : vector<32xf32> to vector<1x32xf32>
    %111 = vector.broadcast %110 : vector<1x32xf32> to vector<8x32xf32>
    %112 = arith.addf %107, %111 : vector<8x32xf32>
    %113 = arith.addf %55, %112 : vector<8x32xf32>
    %114 = vector.shape_cast %113 : vector<8x32xf32> to vector<1x8x32xf32>
    %c0_47 = arith.constant 0 : index
    %c0_48 = arith.constant 0 : index
    %c0_49 = arith.constant 0 : index
    %115 = vector.load %arg14[%c0_47, %c0_48, %c0_49] : memref<1x8x32xf32, #tpu.memory_space<vmem>>, vector<1x8x32xf32>
    tpu.vector_store %arg14[%c0_47, %c0_48, %c0_49], %114 {strides = array<i32>} : memref<1x8x32xf32, #tpu.memory_space<vmem>>, vector<1x8x32xf32>,
    return
  }
  func.func @transform_0(%arg0: i32) -> (i32, i32, i32) {
    %c0_i32 = arith.constant 0 : i32
    %c0_i32_0 = arith.constant 0 : i32
    %c0_i32_1 = arith.constant 0 : i32
    return %arg0, %c0_i32, %c0_i32_0 : i32, i32, i32
  }
  func.func @transform_1(%arg0: i32) -> (i32, i32) {
    %c0_i32 = arith.constant 0 : i32
    %c0_i32_0 = arith.constant 0 : i32
    %c0_i32_1 = arith.constant 0 : i32
    return %c0_i32, %c0_i32_0 : i32, i32
  }
  func.func @transform_2(%arg0: i32) -> (i32, i32) {
    %c0_i32 = arith.constant 0 : i32
    %c0_i32_0 = arith.constant 0 : i32
    %c0_i32_1 = arith.constant 0 : i32
    return %c0_i32, %c0_i32_0 : i32, i32
  }
  func.func @transform_3(%arg0: i32) -> (i32, i32) {
    %c0_i32 = arith.constant 0 : i32
    %c0_i32_0 = arith.constant 0 : i32
    %c0_i32_1 = arith.constant 0 : i32
    return %c0_i32, %c0_i32_0 : i32, i32
  }
  func.func @transform_4(%arg0: i32) -> (i32, i32) {
    %c0_i32 = arith.constant 0 : i32
    %c0_i32_0 = arith.constant 0 : i32
    %c0_i32_1 = arith.constant 0 : i32
    return %c0_i32, %c0_i32_0 : i32, i32
  }
  func.func @transform_5(%arg0: i32) -> (i32, i32) {
    %c0_i32 = arith.constant 0 : i32
    %c0_i32_0 = arith.constant 0 : i32
    %c0_i32_1 = arith.constant 0 : i32
    return %c0_i32, %c0_i32_0 : i32, i32
  }
  func.func @transform_6(%arg0: i32) -> (i32, i32) {
    %c0_i32 = arith.constant 0 : i32
    %c0_i32_0 = arith.constant 0 : i32
    %c0_i32_1 = arith.constant 0 : i32
    return %c0_i32, %c0_i32_0 : i32, i32
  }
  func.func @transform_7(%arg0: i32) -> (i32, i32) {
    %c0_i32 = arith.constant 0 : i32
    %c0_i32_0 = arith.constant 0 : i32
    %c0_i32_1 = arith.constant 0 : i32
    return %c0_i32, %c0_i32_0 : i32, i32
  }
  func.func @transform_8(%arg0: i32) -> (i32, i32) {
    %c0_i32 = arith.constant 0 : i32
    %c0_i32_0 = arith.constant 0 : i32
    %c0_i32_1 = arith.constant 0 : i32
    return %c0_i32, %c0_i32_0 : i32, i32
  }
  func.func @transform_9(%arg0: i32) -> (i32, i32) {
    %c0_i32 = arith.constant 0 : i32
    %c0_i32_0 = arith.constant 0 : i32
    %c0_i32_1 = arith.constant 0 : i32
    return %c0_i32, %c0_i32_0 : i32, i32
  }
  func.func @transform_10(%arg0: i32) -> (i32, i32) {
    %c0_i32 = arith.constant 0 : i32
    %c0_i32_0 = arith.constant 0 : i32
    %c0_i32_1 = arith.constant 0 : i32
    return %c0_i32, %c0_i32_0 : i32, i32
  }
  func.func @transform_11(%arg0: i32) -> (i32, i32) {
    %c0_i32 = arith.constant 0 : i32
    %c0_i32_0 = arith.constant 0 : i32
    %c0_i32_1 = arith.constant 0 : i32
    return %c0_i32, %c0_i32_0 : i32, i32
  }
  func.func @transform_12(%arg0: i32) -> (i32, i32) {
    %c0_i32 = arith.constant 0 : i32
    %c0_i32_0 = arith.constant 0 : i32
    %c0_i32_1 = arith.constant 0 : i32
    return %c0_i32, %c0_i32_0 : i32, i32
  }
  func.func @transform_13(%arg0: i32) -> (i32, i32, i32) {
    %c0_i32 = arith.constant 0 : i32
    %c0_i32_0 = arith.constant 0 : i32
    %c0_i32_1 = arith.constant 0 : i32
    return %arg0, %c0_i32, %c0_i32_0 : i32, i32, i32
  }
}

</mosaic_0001>

<llo_original>
// kernel: mixer_block.1
$region0: #{mixer_block.1}
  #allocation0 [shape = 'u32[]', space=smem, size = 0x4, offset = 0x4, fixed_abs, tag = 'smem constant byte address 0x4 - core index']
  #allocation1 [shape = 'u32[144,128]{1,0:T(1,128)}', space=vmem, size = 0x12000, scoped, tag = 'internal scratch']
  %s0 = inlined_call_operand.vmem [shape: f32[2,8,32], index: 0, kind: input, shape index: {}]
  %s1 = inlined_call_operand.vmem [shape: f32[1,32], index: 1, kind: input, shape index: {}]
  %s2 = inlined_call_operand.vmem [shape: f32[1,32], index: 2, kind: input, shape index: {}]
  %s3 = inlined_call_operand.vmem [shape: bf16[16,8], index: 3, kind: input, shape index: {}]
  %s4 = inlined_call_operand.vmem [shape: f32[16,1], index: 4, kind: input, shape index: {}]
  %s5 = inlined_call_operand.vmem [shape: bf16[8,16], index: 5, kind: input, shape index: {}]
  %s6 = inlined_call_operand.vmem [shape: f32[8,1], index: 6, kind: input, shape index: {}]
  %s7 = inlined_call_operand.vmem [shape: f32[1,32], index: 7, kind: input, shape index: {}]
  %s8 = inlined_call_operand.vmem [shape: f32[1,32], index: 8, kind: input, shape index: {}]
  %s9 = inlined_call_operand.vmem [shape: bf16[32,64], index: 9, kind: input, shape index: {}]
  %s10 = inlined_call_operand.vmem [shape: f32[1,64], index: 10, kind: input, shape index: {}]
  %s11 = inlined_call_operand.vmem [shape: bf16[64,32], index: 11, kind: input, shape index: {}]
  %s12 = inlined_call_operand.vmem [shape: f32[1,32], index: 12, kind: input, shape index: {}]
  %s13 = inlined_call_operand.hbm [shape: f32[2,8,32], index: 13, kind: output, shape index: {}]
  %s14 = sld [smem:[#allocation0]]
  $region85: #{mixer_block.1} parent=0
    _
  %s16 = ssub.s32 1, %s14
  %s17 = scalar_select 0, %s16, %s14
  $region1: #{mixer_block.1} parent=0
    #allocation2 [shape = 'u8[8192]{0}', space=vmem, size = 0x2000, scoped, tag = 'output window, operand 0']
    #allocation3 [shape = 's32[2]{0}', space=sflag, size = 0x8, scoped, tag = 'scoped memory for mixer_block.1']
    %18 = vsyncpa [#allocation3], 0
    %s19 = scalar_lea.sflag [#allocation3], 1
    %20 = vsyncpa %s19, 0
    loop: start=0, step=1, limit=4
    $region2: #{mixer_block.1} parent=1 // loop_pre_header
      _
    $region3: #{mixer_block.1} parent=1 // loop_header
      %s22 = sphi 0, %s26
      %p23 = scmp.ge.s32.totalorder %s22, 4
      %s32 = sphi 0, %s34
      %s35 = sphi 0, %s32
      %s36 = sphi 0, %s35
      %s52 = sphi 0, %s36
      %s56 = sphi 0, %s56
      %s58 = sphi 0, %s56
      %s59 = sphi 0, %s58
      %s73 = sphi 0, %s59
      %s77 = sphi 0, %s77
      %s79 = sphi 0, %s77
      %s80 = sphi 0, %s79
      %s94 = sphi 0, %s80
      %s98 = sphi 0, %s98
      %s100 = sphi 0, %s98
      %s101 = sphi 0, %s100
      %s115 = sphi 0, %s101
      %s119 = sphi 0, %s119
      %s121 = sphi 0, %s119
      %s122 = sphi 0, %s121
      %s136 = sphi 0, %s122
      %s140 = sphi 0, %s140
      %s142 = sphi 0, %s140
      %s143 = sphi 0, %s142
      %s157 = sphi 0, %s143
      %s161 = sphi 0, %s161
      %s163 = sphi 0, %s161
      %s164 = sphi 0, %s163
      %s178 = sphi 0, %s164
      %s182 = sphi 0, %s182
      %s184 = sphi 0, %s182
      %s185 = sphi 0, %s184
      %s199 = sphi 0, %s185
      %s203 = sphi 0, %s203
      %s205 = sphi 0, %s203
      %s206 = sphi 0, %s205
      %s220 = sphi 0, %s206
      %s224 = sphi 0, %s224
      %s226 = sphi 0, %s224
      %s227 = sphi 0, %s226
      %s241 = sphi 0, %s227
      %s245 = sphi 0, %s245
      %s247 = sphi 0, %s245
      %s248 = sphi 0, %s247
      %s262 = sphi 0, %s248
      %s266 = sphi 0, %s266
      %s268 = sphi 0, %s266
      %s269 = sphi 0, %s268
      %s283 = sphi 0, %s269
      %s287 = sphi 0, %s287
      %s289 = sphi 0, %s287
      %s290 = sphi 0, %s289
      %s304 = sphi 0, %s290
      %s310 = sphi 0, %s312
      %s313 = sphi 0, %s310
      %s314 = sphi 0, %s313
      %s330 = sphi 0, %s314
    $region4: #{mixer_block.1} parent=1 // loop_header_branch
      %25 = sbr.rel (%p23) target = $region8
    $region5: #{mixer_block.1} parent=1 // loop_body
      %s27 = ssub.s32 %s22, 1
      %s28 = ssub.s32 %s22, 2
      %s29 = sadd.s32 %s22, 1
      %s30 = ssub.s32 %s22, %s29
      %p31 = scmp.eq.s32.totalorder %s30, 0
      %s33 = sadd.s32 %s32, 1
      %s34 = scalar_select %p31, %s32, %s33
      %p37 = pneg %p31
      %p38 = scmp.eq.s32.totalorder %s22, 1
      %p39 = por %p37, %p38
      %p40 = scmp.ne.s32.totalorder %s32, %s35
      %p41 = scmp.eq.s32.totalorder %s22, 0
      %p42 = por %p40, %p41
      %p43 = scmp.ne.s32.totalorder %s32, %s35
      %p44 = scmp.eq.s32.totalorder %s27, 1
      %p45 = por %p43, %p44
      %p46 = scmp.ne.s32.totalorder %s35, %s36
      %p47 = scmp.eq.s32.totalorder %s27, 0
      %p48 = por %p46, %p47
      %p49 = scmp.ne.s32.totalorder %s35, %s36
      %p50 = scmp.eq.s32.totalorder %s28, 1
      %p51 = por %p49, %p50
      %p53 = scmp.ne.s32.totalorder %s36, %s52
      %p54 = scmp.eq.s32.totalorder %s28, 0
      %p55 = por %p53, %p54
      %s57 = sadd.s32 %s56, 1
      %p60 = scmp.eq.s32.totalorder %s22, 1
      %p61 = scmp.ne.s32.totalorder %s56, %s58
      %p62 = scmp.eq.s32.totalorder %s22, 0
      %p63 = por %p61, %p62
      %p64 = scmp.ne.s32.totalorder %s56, %s58
      %p65 = scmp.eq.s32.totalorder %s27, 1
      %p66 = por %p64, %p65
      %p67 = scmp.ne.s32.totalorder %s58, %s59
      %p68 = scmp.eq.s32.totalorder %s27, 0
      %p69 = por %p67, %p68
      %p70 = scmp.ne.s32.totalorder %s58, %s59
      %p71 = scmp.eq.s32.totalorder %s28, 1
      %p72 = por %p70, %p71
      %p74 = scmp.ne.s32.totalorder %s59, %s73
      %p75 = scmp.eq.s32.totalorder %s28, 0
      %p76 = por %p74, %p75
      %s78 = sadd.s32 %s77, 1
      %p81 = scmp.eq.s32.totalorder %s22, 1
      %p82 = scmp.ne.s32.totalorder %s77, %s79
      %p83 = scmp.eq.s32.totalorder %s22, 0
      %p84 = por %p82, %p83
      %p85 = scmp.ne.s32.totalorder %s77, %s79
      %p86 = scmp.eq.s32.totalorder %s27, 1
      %p87 = por %p85, %p86
      %p88 = scmp.ne.s32.totalorder %s79, %s80
      %p89 = scmp.eq.s32.totalorder %s27, 0
      %p90 = por %p88, %p89
      %p91 = scmp.ne.s32.totalorder %s79, %s80
      %p92 = scmp.eq.s32.totalorder %s28, 1
      %p93 = por %p91, %p92
      %p95 = scmp.ne.s32.totalorder %s80, %s94
      %p96 = scmp.eq.s32.totalorder %s28, 0
      %p97 = por %p95, %p96
      %s99 = sadd.s32 %s98, 1
      %p102 = scmp.eq.s32.totalorder %s22, 1
      %p103 = scmp.ne.s32.totalorder %s98, %s100
      %p104 = scmp.eq.s32.totalorder %s22, 0
      %p105 = por %p103, %p104
      %p106 = scmp.ne.s32.totalorder %s98, %s100
      %p107 = scmp.eq.s32.totalorder %s27, 1
      %p108 = por %p106, %p107
      %p109 = scmp.ne.s32.totalorder %s100, %s101
      %p110 = scmp.eq.s32.totalorder %s27, 0
      %p111 = por %p109, %p110
      %p112 = scmp.ne.s32.totalorder %s100, %s101
      %p113 = scmp.eq.s32.totalorder %s28, 1
      %p114 = por %p112, %p113
      %p116 = scmp.ne.s32.totalorder %s101, %s115
      %p117 = scmp.eq.s32.totalorder %s28, 0
      %p118 = por %p116, %p117
      %s120 = sadd.s32 %s119, 1
      %p123 = scmp.eq.s32.totalorder %s22, 1
      %p124 = scmp.ne.s32.totalorder %s119, %s121
      %p125 = scmp.eq.s32.totalorder %s22, 0
      %p126 = por %p124, %p125
      %p127 = scmp.ne.s32.totalorder %s119, %s121
      %p128 = scmp.eq.s32.totalorder %s27, 1
      %p129 = por %p127, %p128
      %p130 = scmp.ne.s32.totalorder %s121, %s122
      %p131 = scmp.eq.s32.totalorder %s27, 0
      %p132 = por %p130, %p131
      %p133 = scmp.ne.s32.totalorder %s121, %s122
      %p134 = scmp.eq.s32.totalorder %s28, 1
      %p135 = por %p133, %p134
      %p137 = scmp.ne.s32.totalorder %s122, %s136
      %p138 = scmp.eq.s32.totalorder %s28, 0
      %p139 = por %p137, %p138
      %s141 = sadd.s32 %s140, 1
      %p144 = scmp.eq.s32.totalorder %s22, 1
      %p145 = scmp.ne.s32.totalorder %s140, %s142
      %p146 = scmp.eq.s32.totalorder %s22, 0
      %p147 = por %p145, %p146
      %p148 = scmp.ne.s32.totalorder %s140, %s142
      %p149 = scmp.eq.s32.totalorder %s27, 1
      %p150 = por %p148, %p149
      %p151 = scmp.ne.s32.totalorder %s142, %s143
      %p152 = scmp.eq.s32.totalorder %s27, 0
      %p153 = por %p151, %p152
      %p154 = scmp.ne.s32.totalorder %s142, %s143
      %p155 = scmp.eq.s32.totalorder %s28, 1
      %p156 = por %p154, %p155
      %p158 = scmp.ne.s32.totalorder %s143, %s157
      %p159 = scmp.eq.s32.totalorder %s28, 0
      %p160 = por %p158, %p159
      %s162 = sadd.s32 %s161, 1
      %p165 = scmp.eq.s32.totalorder %s22, 1
      %p166 = scmp.ne.s32.totalorder %s161, %s163
      %p167 = scmp.eq.s32.totalorder %s22, 0
      %p168 = por %p166, %p167
      %p169 = scmp.ne.s32.totalorder %s161, %s163
      %p170 = scmp.eq.s32.totalorder %s27, 1
      %p171 = por %p169, %p170
      %p172 = scmp.ne.s32.totalorder %s163, %s164
      %p173 = scmp.eq.s32.totalorder %s27, 0
      %p174 = por %p172, %p173
      %p175 = scmp.ne.s32.totalorder %s163, %s164
      %p176 = scmp.eq.s32.totalorder %s28, 1
      %p177 = por %p175, %p176
      %p179 = scmp.ne.s32.totalorder %s164, %s178
      %p180 = scmp.eq.s32.totalorder %s28, 0
      %p181 = por %p179, %p180
      %s183 = sadd.s32 %s182, 1
      %p186 = scmp.eq.s32.totalorder %s22, 1
      %p187 = scmp.ne.s32.totalorder %s182, %s184
      %p188 = scmp.eq.s32.totalorder %s22, 0
      %p189 = por %p187, %p188
      %p190 = scmp.ne.s32.totalorder %s182, %s184
      %p191 = scmp.eq.s32.totalorder %s27, 1
      %p192 = por %p190, %p191
      %p193 = scmp.ne.s32.totalorder %s184, %s185
      %p194 = scmp.eq.s32.totalorder %s27, 0
      %p195 = por %p193, %p194
      %p196 = scmp.ne.s32.totalorder %s184, %s185
      %p197 = scmp.eq.s32.totalorder %s28, 1
      %p198 = por %p196, %p197
      %p200 = scmp.ne.s32.totalorder %s185, %s199
      %p201 = scmp.eq.s32.totalorder %s28, 0
      %p202 = por %p200, %p201
      %s204 = sadd.s32 %s203, 1
      %p207 = scmp.eq.s32.totalorder %s22, 1
      %p208 = scmp.ne.s32.totalorder %s203, %s205
      %p209 = scmp.eq.s32.totalorder %s22, 0
      %p210 = por %p208, %p209
      %p211 = scmp.ne.s32.totalorder %s203, %s205
      %p212 = scmp.eq.s32.totalorder %s27, 1
      %p213 = por %p211, %p212
      %p214 = scmp.ne.s32.totalorder %s205, %s206
      %p215 = scmp.eq.s32.totalorder %s27, 0
      %p216 = por %p214, %p215
      %p217 = scmp.ne.s32.totalorder %s205, %s206
      %p218 = scmp.eq.s32.totalorder %s28, 1
      %p219 = por %p217, %p218
      %p221 = scmp.ne.s32.totalorder %s206, %s220
      %p222 = scmp.eq.s32.totalorder %s28, 0
      %p223 = por %p221, %p222
      %s225 = sadd.s32 %s224, 1
      %p228 = scmp.eq.s32.totalorder %s22, 1
      %p229 = scmp.ne.s32.totalorder %s224, %s226
      %p230 = scmp.eq.s32.totalorder %s22, 0
      %p231 = por %p229, %p230
      %p232 = scmp.ne.s32.totalorder %s224, %s226
      %p233 = scmp.eq.s32.totalorder %s27, 1
      %p234 = por %p232, %p233
      %p235 = scmp.ne.s32.totalorder %s226, %s227
      %p236 = scmp.eq.s32.totalorder %s27, 0
      %p237 = por %p235, %p236
      %p238 = scmp.ne.s32.totalorder %s226, %s227
      %p239 = scmp.eq.s32.totalorder %s28, 1
      %p240 = por %p238, %p239
      %p242 = scmp.ne.s32.totalorder %s227, %s241
      %p243 = scmp.eq.s32.totalorder %s28, 0
      %p244 = por %p242, %p243
      %s246 = sadd.s32 %s245, 1
      %p249 = scmp.eq.s32.totalorder %s22, 1
      %p250 = scmp.ne.s32.totalorder %s245, %s247
      %p251 = scmp.eq.s32.totalorder %s22, 0
      %p252 = por %p250, %p251
      %p253 = scmp.ne.s32.totalorder %s245, %s247
      %p254 = scmp.eq.s32.totalorder %s27, 1
      %p255 = por %p253, %p254
      %p256 = scmp.ne.s32.totalorder %s247, %s248
      %p257 = scmp.eq.s32.totalorder %s27, 0
      %p258 = por %p256, %p257
      %p259 = scmp.ne.s32.totalorder %s247, %s248
      %p260 = scmp.eq.s32.totalorder %s28, 1
      %p261 = por %p259, %p260
      %p263 = scmp.ne.s32.totalorder %s248, %s262
      %p264 = scmp.eq.s32.totalorder %s28, 0
      %p265 = por %p263, %p264
      %s267 = sadd.s32 %s266, 1
      %p270 = scmp.eq.s32.totalorder %s22, 1
      %p271 = scmp.ne.s32.totalorder %s266, %s268
      %p272 = scmp.eq.s32.totalorder %s22, 0
      %p273 = por %p271, %p272
      %p274 = scmp.ne.s32.totalorder %s266, %s268
      %p275 = scmp.eq.s32.totalorder %s27, 1
      %p276 = por %p274, %p275
      %p277 = scmp.ne.s32.totalorder %s268, %s269
      %p278 = scmp.eq.s32.totalorder %s27, 0
      %p279 = por %p277, %p278
      %p280 = scmp.ne.s32.totalorder %s268, %s269
      %p281 = scmp.eq.s32.totalorder %s28, 1
      %p282 = por %p280, %p281
      %p284 = scmp.ne.s32.totalorder %s269, %s283
      %p285 = scmp.eq.s32.totalorder %s28, 0
      %p286 = por %p284, %p285
      %s288 = sadd.s32 %s287, 1
      %p291 = scmp.eq.s32.totalorder %s22, 1
      %p292 = scmp.ne.s32.totalorder %s287, %s289
      %p293 = scmp.eq.s32.totalorder %s22, 0
      %p294 = por %p292, %p293
      %p295 = scmp.ne.s32.totalorder %s287, %s289
      %p296 = scmp.eq.s32.totalorder %s27, 1
      %p297 = por %p295, %p296
      %p298 = scmp.ne.s32.totalorder %s289, %s290
      %p299 = scmp.eq.s32.totalorder %s27, 0
      %p300 = por %p298, %p299
      %p301 = scmp.ne.s32.totalorder %s289, %s290
      %p302 = scmp.eq.s32.totalorder %s28, 1
      %p303 = por %p301, %p302
      %p305 = scmp.ne.s32.totalorder %s290, %s304
      %p306 = scmp.eq.s32.totalorder %s28, 0
      %p307 = por %p305, %p306
      %s308 = ssub.s32 %s22, %s29
      %p309 = scmp.eq.s32.totalorder %s308, 0
      %s311 = sadd.s32 %s310, 1
      %s312 = scalar_select %p309, %s310, %s311
      %p315 = pneg %p309
      %p316 = scmp.eq.s32.totalorder %s22, 1
      %p317 = por %p315, %p316
      %p318 = scmp.ne.s32.totalorder %s310, %s313
      %p319 = scmp.eq.s32.totalorder %s22, 0
      %p320 = por %p318, %p319
      %p321 = scmp.ne.s32.totalorder %s310, %s313
      %p322 = scmp.eq.s32.totalorder %s27, 1
      %p323 = por %p321, %p322
      %p324 = scmp.ne.s32.totalorder %s313, %s314
      %p325 = scmp.eq.s32.totalorder %s27, 0
      %p326 = por %p324, %p325
      %p327 = scmp.ne.s32.totalorder %s313, %s314
      %p328 = scmp.eq.s32.totalorder %s28, 1
      %p329 = por %p327, %p328
      %p331 = scmp.ne.s32.totalorder %s314, %s330
      %p332 = scmp.eq.s32.totalorder %s28, 0
      %p333 = por %p331, %p332
      %p334 = scmp.le.s32.totalorder 1, %s22
      %p335 = scmp.lt.s32.totalorder %s22, 3
      %p336 = pnand %p334, %p335
      %p337 = pneg %p336
      // Predicated region
      $region9: #{mixer_block.1} parent=5 // pred_check
        _
      $region10: #{mixer_block.1} parent=5 // pred_check_branch
        %339 = sbr.rel (%p336) target = $region12
      $region11: #{mixer_block.1} parent=5 // pred_region
        %s340 = ssub.s32 %s22, 1
        // Predicated region
        $region13: #{mixer_block.1} parent=11 // pred_check
          %p341 = pneg %p69
        $region14: #{mixer_block.1} parent=11 // pred_check_branch
          %343 = sbr.rel (%p341) target = $region16
        $region15: #{mixer_block.1} parent=11 // pred_region
          _
        $region16: #{mixer_block.1} parent=11 // pred_fallthru
          _
        // Predicated region
        $region17: #{mixer_block.1} parent=11 // pred_check
          %p344 = pneg %p90
        $region18: #{mixer_block.1} parent=11 // pred_check_branch
          %346 = sbr.rel (%p344) target = $region20
        $region19: #{mixer_block.1} parent=11 // pred_region
          _
        $region20: #{mixer_block.1} parent=11 // pred_fallthru
          _
        // Predicated region
        $region21: #{mixer_block.1} parent=11 // pred_check
          %p347 = pneg %p111
        $region22: #{mixer_block.1} parent=11 // pred_check_branch
          %349 = sbr.rel (%p347) target = $region24
        $region23: #{mixer_block.1} parent=11 // pred_region
          _
        $region24: #{mixer_block.1} parent=11 // pred_fallthru
          _
        // Predicated region
        $region25: #{mixer_block.1} parent=11 // pred_check
          %p350 = pneg %p132
        $region26: #{mixer_block.1} parent=11 // pred_check_branch
          %352 = sbr.rel (%p350) target = $region28
        $region27: #{mixer_block.1} parent=11 // pred_region
          _
        $region28: #{mixer_block.1} parent=11 // pred_fallthru
          _
        // Predicated region
        $region29: #{mixer_block.1} parent=11 // pred_check
          %p353 = pneg %p153
        $region30: #{mixer_block.1} parent=11 // pred_check_branch
          %355 = sbr.rel (%p353) target = $region32
        $region31: #{mixer_block.1} parent=11 // pred_region
          _
        $region32: #{mixer_block.1} parent=11 // pred_fallthru
          _
        // Predicated region
        $region33: #{mixer_block.1} parent=11 // pred_check
          %p356 = pneg %p174
        $region34: #{mixer_block.1} parent=11 // pred_check_branch
          %358 = sbr.rel (%p356) target = $region36
        $region35: #{mixer_block.1} parent=11 // pred_region
          _
        $region36: #{mixer_block.1} parent=11 // pred_fallthru
          _
        // Predicated region
        $region37: #{mixer_block.1} parent=11 // pred_check
          %p359 = pneg %p195
        $region38: #{mixer_block.1} parent=11 // pred_check_branch
          %361 = sbr.rel (%p359) target = $region40
        $region39: #{mixer_block.1} parent=11 // pred_region
          _
        $region40: #{mixer_block.1} parent=11 // pred_fallthru
          _
        // Predicated region
        $region41: #{mixer_block.1} parent=11 // pred_check
          %p362 = pneg %p216
        $region42: #{mixer_block.1} parent=11 // pred_check_branch
          %364 = sbr.rel (%p362) target = $region44
        $region43: #{mixer_block.1} parent=11 // pred_region
          _
        $region44: #{mixer_block.1} parent=11 // pred_fallthru
          _
        // Predicated region
        $region45: #{mixer_block.1} parent=11 // pred_check
          %p365 = pneg %p237
        $region46: #{mixer_block.1} parent=11 // pred_check_branch
          %367 = sbr.rel (%p365) target = $region48
        $region47: #{mixer_block.1} parent=11 // pred_region
          _
        $region48: #{mixer_block.1} parent=11 // pred_fallthru
          _
        // Predicated region
        $region49: #{mixer_block.1} parent=11 // pred_check
          %p368 = pneg %p258
        $region50: #{mixer_block.1} parent=11 // pred_check_branch
          %370 = sbr.rel (%p368) target = $region52
        $region51: #{mixer_block.1} parent=11 // pred_region
          _
        $region52: #{mixer_block.1} parent=11 // pred_fallthru
          _
        // Predicated region
        $region53: #{mixer_block.1} parent=11 // pred_check
          %p371 = pneg %p279
        $region54: #{mixer_block.1} parent=11 // pred_check_branch
          %373 = sbr.rel (%p371) target = $region56
        $region55: #{mixer_block.1} parent=11 // pred_region
          _
        $region56: #{mixer_block.1} parent=11 // pred_fallthru
          _
        // Predicated region
        $region57: #{mixer_block.1} parent=11 // pred_check
          %p374 = pneg %p300
        $region58: #{mixer_block.1} parent=11 // pred_check_branch
          %376 = sbr.rel (%p374) target = $region60
        $region59: #{mixer_block.1} parent=11 // pred_region
          _
        $region60: #{mixer_block.1} parent=11 // pred_fallthru
          _
      $region12: #{mixer_block.1} parent=5 // pred_fallthru
        _
      %p377 = scmp.lt.s32.totalorder %s22, 2
      // Predicated region
      $region61: #{mixer_block.1} parent=5 // pred_check
        %p378 = pneg %p377
      $region62: #{mixer_block.1} parent=5 // pred_check_branch
        %380 = sbr.rel (%p378) target = $region64
      $region63: #{mixer_block.1} parent=5 // pred_region
        // Predicated region
        $region65: #{mixer_block.1} parent=63 // pred_check
          %p381 = pneg %p42
        $region66: #{mixer_block.1} parent=63 // pred_check_branch
          %383 = sbr.rel (%p381) target = $region68
        $region67: #{mixer_block.1} parent=63 // pred_region
          %p384 = scmp.lt.s32.totalorder %s22, 1
          %s385 = scalar_select %p384, %s22, 1
          %s386 = smul.addr %s385, 8
          %s387 = scalar_lea.vmem %s0, %s386
        $region68: #{mixer_block.1} parent=63 // pred_fallthru
          _
      $region64: #{mixer_block.1} parent=5 // pred_fallthru
        _
      %p388 = scmp.le.s32.totalorder 1, %s22
      %p389 = scmp.lt.s32.totalorder %s22, 3
      %p390 = pnand %p388, %p389
      %p391 = pneg %p390
      // Predicated region
      $region69: #{mixer_block.1} parent=5 // pred_check
        _
      $region70: #{mixer_block.1} parent=5 // pred_check_branch
        %393 = sbr.rel (%p390) target = $region72
      $region71: #{mixer_block.1} parent=5 // pred_region
        %s394 = ssub.s32 %s22, 1
        %p395 = scmp.lt.s32.totalorder %s27, 1
        %s396 = scalar_select %p395, %s27, 1
        %s397 = smul.addr %s396, 8
        %s398 = scalar_lea.vmem %s0, %s397
        %p399 = pneg %p48
        %p400 = pneg %p45
        %p401 = pneg %p69
        %p402 = pneg %p66
        %p403 = pneg %p90
        %p404 = pneg %p87
        %p405 = pneg %p111
        %p406 = pneg %p108
        %p407 = pneg %p132
        %p408 = pneg %p129
        %p409 = pneg %p153
        %p410 = pneg %p150
        %p411 = pneg %p174
        %p412 = pneg %p171
        %p413 = pneg %p195
        %p414 = pneg %p192
        %p415 = pneg %p216
        %p416 = pneg %p213
        %p417 = pneg %p237
        %p418 = pneg %p234
        %p419 = pneg %p258
        %p420 = pneg %p255
        %p421 = pneg %p279
        %p422 = pneg %p276
        %p423 = pneg %p300
        %p424 = pneg %p297
        %p425 = pneg %p326
        %p426 = pneg %p323
        %s427 = sand.u32 %s313, 1
        %s428 = scalar_lea.sflag [#allocation3], %s427
        %s429 = sand.u32 %s313, 1
        %s430 = smul.addr %s429, 8
        %s431 = scalar_lea.vmem [#allocation2], %s430
        %p432 = scmp.lt.s32.totalorder %s27, 1
        %s433 = scalar_select %p432, %s27, 1
        %s434 = smul.addr %s433, 8
        %s435 = scalar_lea.vmem %s0, %s434
        %v437 = vld [vmem:[%s435] sm:$0xff]
        %v438 = vld [vmem:[%s1] sm:$0x1]
        %v439 = vld [vmem:[%s2] sm:$0x1]
        %vm440 = vcmask 261120
        %v441 = vsel %vm440, %v437, 0.0
        %442 = vadd.xlane.f32.xlu0 %v441
        %v443 = vpop.xlane.xlu0 %442
        %v444 = vmul.f32 %v437, %v437
        %v445 = vsel %vm440, %v444, 0.0
        %446 = vadd.xlane.f32.xlu0 %v445
        %v447 = vpop.xlane.xlu0 %446
        %v448 = vmul.f32 %v443, 0.03125
        %v449 = vmul.f32 %v447, 0.03125
        %v450 = vmul.f32 %v448, %v448
        %v451 = vsub.f32 %v449, %v450
        %v452 = vsub.f32 %v437, %v448
        %v453 = vadd.f32 %v451, 1e-05
        %v454 = vrsqrt.pop %v453
        %v455 = vmul.f32 %v452, %v454
        %v457 = vlaneseq
        %v458 = vshrl.u32 %v457, 7
        %v459 = vsub.s32 0, %v458
        %v460 = vrot.slane %v438, %v459
        %v462 = vmul.f32 %v455, %v460
        %v464 = vlaneseq
        %v465 = vshrl.u32 %v464, 7
        %v466 = vsub.s32 0, %v465
        %v467 = vrot.slane %v439, %v466
        %v469 = vadd.f32 %v462, %v467
        %v470 = vld [vmem:[%s3] sm:$0xf]
        %v471 = vld [vmem:[%s3 + $0x4] sm:$0xf]
        %v472 = vpack.c.bf16 %v469, %v469
        %v473 = vld [vmem:[%s4] sm:$0xff]
        %v474 = vld [vmem:[%s4 + $0x8] sm:$0xff]
        %476 = vset.pattern.permute.xlu0 0
        %477 = vperm.xlu0 %476, %v473
        %v478 = vpop.permute.xlu0 %477
        %481 = vset.pattern.permute.xlu0 0
        %482 = vperm.xlu0 %481, %v474
        %v483 = vpop.permute.xlu0 %482
        %v487 = vunpack.c.l.b16 %v470
        %v488 = vunpack.c.l.b16 %v471
        %v489 = vpack.c.b16 %v488, %v487
        %vm490 = vcmask 64512
        %v492 = vsel %vm490, %v489, 0
        %vm494 = vcmask 1043456
        %v496 = vsel %vm494, %v472, 0
        %498 = vmatprep.subr.bf16.mxu0 0
        %499 = vmatpush1.bf16.msra.mxu0 %v496
        %500 = vmatprep.subr.bf16.mxu0 0
        %501 = vmatpush1.bf16.msra.mxu0 0
        %502 = vmatprep.subr.bf16.mxu0 0
        %503 = vmatpush1.bf16.msra.mxu0 0
        %504 = vmatprep.subr.bf16.mxu0 0
        %505 = vmatpush1.bf16.msra.mxu0 0
        %506 = vmatprep.subr.bf16.mxu0 0
        %507 = vmatpush1.bf16.msra.mxu0 0
        %508 = vmatprep.subr.bf16.mxu0 0
        %509 = vmatpush1.bf16.msra.mxu0 0
        %510 = vmatprep.subr.bf16.mxu0 0
        %511 = vmatpush1.bf16.msra.mxu0 0
        %512 = vmatprep.subr.bf16.mxu0 0
        %513 = vmatpush1.bf16.msra.mxu0 0
        %514 = vmatprep.subr.bf16.mxu0 0
        %515 = vmatpush1.bf16.msra.mxu0 0
        %516 = vmatprep.subr.bf16.mxu0 0
        %517 = vmatpush1.bf16.msra.mxu0 0
        %518 = vmatprep.subr.bf16.mxu0 0
        %519 = vmatpush1.bf16.msra.mxu0 0
        %520 = vmatprep.subr.bf16.mxu0 0
        %521 = vmatpush1.bf16.msra.mxu0 0
        %522 = vmatprep.subr.bf16.mxu0 0
        %523 = vmatpush1.bf16.msra.mxu0 0
        %524 = vmatprep.subr.bf16.mxu0 0
        %525 = vmatpush1.bf16.msra.mxu0 0
        %526 = vmatprep.subr.bf16.mxu0 0
        %527 = vmatpush1.bf16.msra.mxu0 0
        %528 = vmatprep.subr.bf16.mxu0 0
        %529 = vmatpush1.bf16.msra.mxu0 0
        %530 = vmatprep.mubr.bf16.mxu0 0
        %531 = vmatmul.mubr.bf16.gmra.mrb[0].mxu0 %v492
        %v532 = vpop.f32.mrb[0].mxu0
        %v533 = vadd.f32 %v478, %v532
        %v534 = vpop.f32.mrb[0].mxu0
        %v535 = vpop.f32.mrb[0].mxu0
        %v536 = vadd.f32 %v483, %v535
        %v537 = vpop.f32.mrb[0].mxu0
        %538 = vdwg.mxu0
        %v539 = vmul.f32 %v533, 0.5
        %v540 = vmul.f32 %v536, 0.5
        %v541 = vmul.f32 %v533, 0.044715
        %v542 = vmul.f32 %v536, 0.044715
        %v543 = vmul.f32 %v541, %v533
        %v544 = vmul.f32 %v542, %v536
        %v545 = vmul.f32 %v543, %v533
        %v546 = vmul.f32 %v544, %v536
        %v547 = vadd.f32 %v533, %v545
        %v548 = vadd.f32 %v536, %v546
        %v549 = vmul.f32 %v547, 0.7978846
        %v550 = vmul.f32 %v548, 0.7978846
        %v551 = vtanh.pop %v549
        %v552 = vtanh.pop %v550
        %v553 = vadd.f32 %v551, 1.0
        %v554 = vadd.f32 %v552, 1.0
        %v555 = vmul.f32 %v539, %v553
        %v556 = vmul.f32 %v540, %v554
        %v557 = vld [vmem:[%s5] sm:$0xf]
        %v558 = vpack.c.bf16 %v556, %v555
        %v559 = vld [vmem:[%s6] sm:$0xff]
        %561 = vset.pattern.permute.xlu0 0
        %562 = vperm.xlu0 %561, %v559
        %v563 = vpop.permute.xlu0 %562
        %vm565 = vcmask 130048
        %v567 = vsel %vm565, %v557, 0
        %569 = vmatprep.subr.bf16.mxu0 0
        %570 = vmatpush1.bf16.msra.mxu0 %v558
        %571 = vmatprep.subr.bf16.mxu0 0
        %572 = vmatpush1.bf16.msra.mxu0 0
        %573 = vmatprep.subr.bf16.mxu0 0
        %574 = vmatpush1.bf16.msra.mxu0 0
        %575 = vmatprep.subr.bf16.mxu0 0
        %576 = vmatpush1.bf16.msra.mxu0 0
        %577 = vmatprep.subr.bf16.mxu0 0
        %578 = vmatpush1.bf16.msra.mxu0 0
        %579 = vmatprep.subr.bf16.mxu0 0
        %580 = vmatpush1.bf16.msra.mxu0 0
        %581 = vmatprep.subr.bf16.mxu0 0
        %582 = vmatpush1.bf16.msra.mxu0 0
        %583 = vmatprep.subr.bf16.mxu0 0
        %584 = vmatpush1.bf16.msra.mxu0 0
        %585 = vmatprep.subr.bf16.mxu0 0
        %586 = vmatpush1.bf16.msra.mxu0 0
        %587 = vmatprep.subr.bf16.mxu0 0
        %588 = vmatpush1.bf16.msra.mxu0 0
        %589 = vmatprep.subr.bf16.mxu0 0
        %590 = vmatpush1.bf16.msra.mxu0 0
        %591 = vmatprep.subr.bf16.mxu0 0
        %592 = vmatpush1.bf16.msra.mxu0 0
        %593 = vmatprep.subr.bf16.mxu0 0
        %594 = vmatpush1.bf16.msra.mxu0 0
        %595 = vmatprep.subr.bf16.mxu0 0
        %596 = vmatpush1.bf16.msra.mxu0 0
        %597 = vmatprep.subr.bf16.mxu0 0
        %598 = vmatpush1.bf16.msra.mxu0 0
        %599 = vmatprep.subr.bf16.mxu0 0
        %600 = vmatpush1.bf16.msra.mxu0 0
        %601 = vmatprep.mubr.bf16.mxu0 0
        %602 = vmatmul.mubr.bf16.gmra.mrb[0].mxu0 %v567
        %v603 = vpop.f32.mrb[0].mxu0
        %v604 = vadd.f32 %v563, %v603
        %v605 = vpop.f32.mrb[0].mxu0
        %v606 = vpop.f32.mrb[0].mxu0
        %v607 = vpop.f32.mrb[0].mxu0
        %608 = vdwg.mxu0
        %v609 = vadd.f32 %v437, %v604
        %v610 = vld [vmem:[%s7] sm:$0x1]
        %v611 = vld [vmem:[%s8] sm:$0x1]
        %v612 = vsel %vm440, %v609, 0.0
        %613 = vadd.xlane.f32.xlu0 %v612
        %v614 = vpop.xlane.xlu0 %613
        %v615 = vmul.f32 %v609, %v609
        %v616 = vsel %vm440, %v615, 0.0
        %617 = vadd.xlane.f32.xlu0 %v616
        %v618 = vpop.xlane.xlu0 %617
        %v619 = vmul.f32 %v614, 0.03125
        %v620 = vmul.f32 %v618, 0.03125
        %v621 = vmul.f32 %v619, %v619
        %v622 = vsub.f32 %v620, %v621
        %v623 = vsub.f32 %v609, %v619
        %v624 = vadd.f32 %v622, 1e-05
        %v625 = vrsqrt.pop %v624
        %v626 = vmul.f32 %v623, %v625
        %v628 = vlaneseq
        %v629 = vshrl.u32 %v628, 7
        %v630 = vsub.s32 0, %v629
        %v631 = vrot.slane %v610, %v630
        %v633 = vmul.f32 %v626, %v631
        %v635 = vlaneseq
        %v636 = vshrl.u32 %v635, 7
        %v637 = vsub.s32 0, %v636
        %v638 = vrot.slane %v611, %v637
        %v640 = vadd.f32 %v633, %v638
        %v641 = vpack.c.bf16 %v640, %v640
        %v642 = vld [vmem:[%s9] sm:$0xf]
        %v643 = vld [vmem:[%s9 + $0x4] sm:$0xf]
        %v644 = vld [vmem:[%s9 + $0x8] sm:$0xf]
        %v645 = vld [vmem:[%s9 + $0xc] sm:$0xf]
        %v646 = vld [vmem:[%s10] sm:$0x1]
        %v648 = vlaneseq
        %v649 = vshrl.u32 %v648, 7
        %v650 = vsub.s32 0, %v649
        %v651 = vrot.slane %v646, %v650
        %v657 = vunpack.c.l.b16 %v642
        %v658 = vunpack.c.l.b16 %v643
        %v659 = vunpack.c.l.b16 %v644
        %v660 = vunpack.c.l.b16 %v645
        %v661 = vpack.c.b16 %v658, %v657
        %v662 = vpack.c.b16 %v660, %v659
        %v666 = vsel %vm440, %v641, 0
        %668 = vmatprep.subr.bf16.mxu0 0
        %669 = vmatpush1.bf16.msra.mxu0 %v661
        %670 = vmatprep.subr.bf16.mxu0 0
        %671 = vmatpush1.bf16.msra.mxu0 %v662
        %672 = vmatprep.subr.bf16.mxu0 0
        %673 = vmatpush1.bf16.msra.mxu0 0
        %674 = vmatprep.subr.bf16.mxu0 0
        %675 = vmatpush1.bf16.msra.mxu0 0
        %676 = vmatprep.subr.bf16.mxu0 0
        %677 = vmatpush1.bf16.msra.mxu0 0
        %678 = vmatprep.subr.bf16.mxu0 0
        %679 = vmatpush1.bf16.msra.mxu0 0
        %680 = vmatprep.subr.bf16.mxu0 0
        %681 = vmatpush1.bf16.msra.mxu0 0
        %682 = vmatprep.subr.bf16.mxu0 0
        %683 = vmatpush1.bf16.msra.mxu0 0
        %684 = vmatprep.subr.bf16.mxu0 0
        %685 = vmatpush1.bf16.msra.mxu0 0
        %686 = vmatprep.subr.bf16.mxu0 0
        %687 = vmatpush1.bf16.msra.mxu0 0
        %688 = vmatprep.subr.bf16.mxu0 0
        %689 = vmatpush1.bf16.msra.mxu0 0
        %690 = vmatprep.subr.bf16.mxu0 0
        %691 = vmatpush1.bf16.msra.mxu0 0
        %692 = vmatprep.subr.bf16.mxu0 0
        %693 = vmatpush1.bf16.msra.mxu0 0
        %694 = vmatprep.subr.bf16.mxu0 0
        %695 = vmatpush1.bf16.msra.mxu0 0
        %696 = vmatprep.subr.bf16.mxu0 0
        %697 = vmatpush1.bf16.msra.mxu0 0
        %698 = vmatprep.subr.bf16.mxu0 0
        %699 = vmatpush1.bf16.msra.mxu0 0
        %700 = vmatprep.mubr.bf16.mxu0 0
        %701 = vmatmul.mubr.bf16.gmra.mrb[0].mxu0 %v666
        %v702 = vpop.f32.mrb[0].mxu0
        %v703 = vadd.f32 %v651, %v702
        %v704 = vpop.f32.mrb[0].mxu0
        %v705 = vpop.f32.mrb[0].mxu0
        %v706 = vpop.f32.mrb[0].mxu0
        %707 = vdwg.mxu0
        %v708 = vmul.f32 %v703, 0.5
        %v709 = vmul.f32 %v703, 0.044715
        %v710 = vmul.f32 %v709, %v703
        %v711 = vmul.f32 %v710, %v703
        %v712 = vadd.f32 %v703, %v711
        %v713 = vmul.f32 %v712, 0.7978846
        %v714 = vtanh.pop %v713
        %v715 = vadd.f32 %v714, 1.0
        %v716 = vmul.f32 %v708, %v715
        %v717 = vpack.c.bf16 %v716, %v716
        %v718 = vld [vmem:[%s11] sm:$0xf]
        %v719 = vld [vmem:[%s11 + $0x4] sm:$0xf]
        %v720 = vld [vmem:[%s11 + $0x8] sm:$0xf]
        %v721 = vld [vmem:[%s11 + $0xc] sm:$0xf]
        %v722 = vld [vmem:[%s11 + $0x10] sm:$0xf]
        %v723 = vld [vmem:[%s11 + $0x14] sm:$0xf]
        %v724 = vld [vmem:[%s11 + $0x18] sm:$0xf]
        %v725 = vld [vmem:[%s11 + $0x1c] sm:$0xf]
        %v726 = vld [vmem:[%s12] sm:$0x1]
        %v728 = vlaneseq
        %v729 = vshrl.u32 %v728, 7
        %v730 = vsub.s32 0, %v729
        %v731 = vrot.slane %v726, %v730
        %v741 = vunpack.c.l.b16 %v718
        %v742 = vunpack.c.l.b16 %v719
        %v743 = vunpack.c.l.b16 %v720
        %v744 = vunpack.c.l.b16 %v721
        %v745 = vunpack.c.l.b16 %v722
        %v746 = vunpack.c.l.b16 %v723
        %v747 = vunpack.c.l.b16 %v724
        %v748 = vunpack.c.l.b16 %v725
        %v749 = vpack.c.b16 %v742, %v741
        %v750 = vpack.c.b16 %v744, %v743
        %v751 = vpack.c.b16 %v746, %v745
        %v752 = vpack.c.b16 %v748, %v747
        %vm757 = vcmask 523264
        %v759 = vsel %vm757, %v717, 0
        %761 = vmatprep.subr.bf16.mxu0 0
        %762 = vmatpush1.bf16.msra.mxu0 %v749
        %763 = vmatprep.subr.bf16.mxu0 0
        %764 = vmatpush1.bf16.msra.mxu0 %v750
        %765 = vmatprep.subr.bf16.mxu0 0
        %766 = vmatpush1.bf16.msra.mxu0 %v751
        %767 = vmatprep.subr.bf16.mxu0 0
        %768 = vmatpush1.bf16.msra.mxu0 %v752
        %769 = vmatprep.subr.bf16.mxu0 0
        %770 = vmatpush1.bf16.msra.mxu0 0
        %771 = vmatprep.subr.bf16.mxu0 0
        %772 = vmatpush1.bf16.msra.mxu0 0
        %773 = vmatprep.subr.bf16.mxu0 0
        %774 = vmatpush1.bf16.msra.mxu0 0
        %775 = vmatprep.subr.bf16.mxu0 0
        %776 = vmatpush1.bf16.msra.mxu0 0
        %777 = vmatprep.subr.bf16.mxu0 0
        %778 = vmatpush1.bf16.msra.mxu0 0
        %779 = vmatprep.subr.bf16.mxu0 0
        %780 = vmatpush1.bf16.msra.mxu0 0
        %781 = vmatprep.subr.bf16.mxu0 0
        %782 = vmatpush1.bf16.msra.mxu0 0
        %783 = vmatprep.subr.bf16.mxu0 0
        %784 = vmatpush1.bf16.msra.mxu0 0
        %785 = vmatprep.subr.bf16.mxu0 0
        %786 = vmatpush1.bf16.msra.mxu0 0
        %787 = vmatprep.subr.bf16.mxu0 0
        %788 = vmatpush1.bf16.msra.mxu0 0
        %789 = vmatprep.subr.bf16.mxu0 0
        %790 = vmatpush1.bf16.msra.mxu0 0
        %791 = vmatprep.subr.bf16.mxu0 0
        %792 = vmatpush1.bf16.msra.mxu0 0
        %793 = vmatprep.mubr.bf16.mxu0 0
        %794 = vmatmul.mubr.bf16.gmra.mrb[0].mxu0 %v759
        %v795 = vpop.f32.mrb[0].mxu0
        %v796 = vadd.f32 %v731, %v795
        %v797 = vpop.f32.mrb[0].mxu0
        %v798 = vpop.f32.mrb[0].mxu0
        %v799 = vpop.f32.mrb[0].mxu0
        %800 = vdwg.mxu0
        %v801 = vadd.f32 %v609, %v796
        %802 = vst.msk [vmem:[%s431] sm:$0xff] %vm440, %v801
        %s803 = sand.u32 %s313, 1
        %s804 = scalar_lea.sflag [#allocation3], %s803
        %s805 = sand.u32 %s313, 1
        %s806 = smul.addr %s805, 8
        %s807 = scalar_lea.vmem [#allocation2], %s806
        // Predicated region
        $region73: #{mixer_block.1} parent=71 // pred_check
          %p808 = pneg %p323
        $region74: #{mixer_block.1} parent=71 // pred_check_branch
          %810 = sbr.rel (%p808) target = $region76
        $region75: #{mixer_block.1} parent=71 // pred_region
          %s812 = ssub.s32 128, 128
          %813 = vsyncadd %s804, %s812
          %s814 = smul.addr %s27, 128
          %s815 = scalar_lea.hbm %s13, %s814
          %s817 = sshll.u32 %s807, 4
          %s818 = int_to_ptr.vmem [resolvable:$true] %s817
          %820 = dma.vmem_to_hbm [thread:$0]  %s818, 128, %s815, %s804
        $region76: #{mixer_block.1} parent=71 // pred_fallthru
          _
      $region72: #{mixer_block.1} parent=5 // pred_fallthru
        _
      %p821 = scmp.le.s32.totalorder 2, %s22
      // Predicated region
      $region77: #{mixer_block.1} parent=5 // pred_check
        %p822 = pneg %p821
      $region78: #{mixer_block.1} parent=5 // pred_check_branch
        %824 = sbr.rel (%p822) target = $region80
      $region79: #{mixer_block.1} parent=5 // pred_region
        %s825 = ssub.s32 %s22, 2
        // Predicated region
        $region81: #{mixer_block.1} parent=79 // pred_check
          %p826 = pneg %p329
        $region82: #{mixer_block.1} parent=79 // pred_check_branch
          %828 = sbr.rel (%p826) target = $region84
        $region83: #{mixer_block.1} parent=79 // pred_region
          %s829 = sand.u32 %s314, 1
          %s830 = scalar_lea.sflag [#allocation3], %s829
          %s831 = sand.u32 %s314, 1
          %s832 = smul.addr %s831, 8
          %s833 = scalar_lea.vmem [#allocation2], %s832
          %834 = dma.done %s830, 128
        $region84: #{mixer_block.1} parent=79 // pred_fallthru
          _
      $region80: #{mixer_block.1} parent=5 // pred_fallthru
        _
    $region6: #{mixer_block.1} parent=1 // loop_footer
      %s26 = sadd.s32 1, %s22
    $region7: #{mixer_block.1} parent=1 // loop_footer_branch
      %21 = sbr.rel target = $region3
    $region8: #{mixer_block.1} parent=1 // loop_exit
      _
    %835 = vsyncpa [#allocation3], 1
    %s836 = scalar_lea.sflag [#allocation3], 1
    %837 = vsyncpa %s836, 1

</llo_original>
